<compile_context>
chip_gen: v7x
topology: tpu7x:2x2x1
jax: 0.10.0
libtpu: 0.0.40
codegen_flags: <defaults>
</compile_context>

<pallas_src>
import math

import jax
import jax.numpy as jnp
from jax.experimental import pallas as pl
from jax.experimental.pallas import tpu as pltpu


def _rmdn_train_kernel(w1_ref, w2_ref, y_ref, beta_ref, res_ref, beta_out_ref):
    """One F-tile: out = [[A];[K]]@Y + [[B];[C]]@beta; rows [:N] -> residual,
    rows [N:] -> beta_new.  Two stacked dots instead of four tiny ones."""
    out = (jnp.dot(w1_ref[...], y_ref[...], preferred_element_type=jnp.float32)
           + jnp.dot(w2_ref[...], beta_ref[...], preferred_element_type=jnp.float32))
    n = res_ref.shape[0]
    res_ref[...] = out[:n].astype(res_ref.dtype)
    beta_out_ref[...] = out[n:].astype(beta_out_ref.dtype)


def _rmdn_eval_kernel(bn_ref, y_ref, beta_ref, res_ref):
    """One F-tile of eval mode: res = Y - Xz@beta  (bn = -Xz); no beta writeback."""
    corr = jnp.dot(bn_ref[...], beta_ref[...], preferred_element_type=jnp.float32)
    res_ref[...] = y_ref[...] + corr.astype(res_ref.dtype)


def _default_block_f():
    """Generation-dependent F-tile target (amortize ~0.35us/grid-step overhead)."""
    try:
        kind = jax.devices()[0].device_kind.lower()
    except Exception:
        return 32768
    if "v6" in kind or "v7" in kind:
        return 65536
    return 32768


def _pick_block_f(F, target):
    """Return (block_f, num_steps): 128-aligned (or full-F) tile, <= target cols.

    Prefers exact 128-aligned divisors of F with an even step count >= 2 (so the
    'parallel' grid axis shards over both v7x TensorCores).  If no reasonable
    divisor exists, the ragged last tile is left to Pallas' masked partial block
    -- no jnp.pad / output re-slice, hence no extra HBM passes."""
    target = max(128, (target // 128) * 128)
    if F <= 256:
        return F, 1                                   # single full-dim tile
    cap = max(128, min(target, 128 * ((F - 1) // 128)))   # guarantees >= 2 steps
    best_odd = None
    cand = cap
    while cand >= 128:
        if F % cand == 0:
            steps = F // cand
            if steps % 2 == 0:
                return cand, steps                    # exact divisor, even steps
            if best_odd is None:
                best_odd = (cand, steps)
        cand -= 128
    if best_odd is not None and best_odd[0] >= 512:
        return best_odd                               # exact divisor, odd steps
    return cap, -(-F // cap)                          # ragged (masked) last tile


def _buffer_bytes(rows, cols, dtype):
    """VMEM footprint of one pipelined buffer after (sublane, lane) padding."""
    itemsize = jnp.dtype(dtype).itemsize
    sub = 8 * max(1, 4 // itemsize)                   # 8 (f32) / 16 (bf16) / 32 (i8)
    return (-(-rows // sub) * sub) * (-(-cols // 128) * 128) * itemsize


def _vmem_limit(buffer_specs):
    """Scoped-VMEM budget: double-buffered tiled operands + headroom."""
    need = 2 * sum(_buffer_bytes(*s) for s in buffer_specs)
    return int(min(100 * 2 ** 20, max(32 * 2 ** 20, need + 4 * 2 ** 20)))


def rmdn_forward(x, bias, beta, P, *, training=True, forgetting_factor=0.999,
                 reg=1e-4, block_f=None, beta_io_dtype=jnp.float32):
    """Returns (residual, beta_new, P_new) reproducing RecursiveMetadataNorm.forward.

    beta_io_dtype: storage dtype of the streamed beta operand / beta_new output.
    f32 (default) keeps parity with the PyTorch buffer; bf16 cuts ~30% of HBM
    traffic at a small numeric drift of the RLS state."""
    N = x.shape[0]
    F = math.prod(x.shape[1:])
    if block_f is None:
        block_f = _default_block_f()
    block_f, nsteps = _pick_block_f(F, block_f)

    Y = x.reshape(N, F)                               # native dtype (bf16 stays bf16)
    X = bias.astype(jnp.float32)
    beta32 = beta.astype(jnp.float32)
    P = P.astype(jnp.float32)
    Xz = X.at[:, 0].set(0.0)                          # encodes X[:, 1:] @ beta[1:]

    grid = (nsteps,)
    y_spec = pl.BlockSpec((N, block_f), lambda j: (0, j))
    beta_spec = pl.BlockSpec((3, block_f), lambda j: (0, j))
    small = lambda shape: pl.BlockSpec(shape, lambda j: (0, 0))

    if training:
        # TODO(synk): the 3x3/NxN RLS Riccati update needs a matrix inverse, which
        # has no clean Pallas equivalent; it is tiny (O(N^3)) and done in plain JAX.
        P1 = P / forgetting_factor
        S = jnp.eye(N, dtype=jnp.float32) + X @ P1 @ X.T
        K = P1 @ X.T @ jnp.linalg.inv(S)                             # (3, N)
        P_new = P1 - K @ X @ P1 + reg * jnp.eye(3, dtype=jnp.float32)

        # Fold the serial RLS chain into constant matrices and stack them so the
        # kernel needs only two dots per tile.
        C = jnp.eye(3, dtype=jnp.float32) - K @ X                    # (3, 3)
        A = jnp.eye(N, dtype=jnp.float32) - Xz @ K                   # (N, N)
        B = Xz @ (K @ X - jnp.eye(3, dtype=jnp.float32))             # (N, 3)
        W1 = jnp.concatenate([A, K], axis=0).astype(x.dtype)         # (N+3, N)
        W2 = jnp.concatenate([B, C], axis=0).astype(beta_io_dtype)   # (N+3, 3)
        beta_in = beta32.astype(beta_io_dtype)

        vmem = _vmem_limit([(N, block_f, x.dtype), (3, block_f, beta_in.dtype),
                            (N, block_f, x.dtype), (3, block_f, beta_io_dtype)])
        res_flat, beta_new = pl.pallas_call(
            _rmdn_train_kernel,
            out_shape=(
                jax.ShapeDtypeStruct((N, F), x.dtype),
                jax.ShapeDtypeStruct((3, F), beta_io_dtype),
            ),
            grid_spec=pltpu.PrefetchScalarGridSpec(
                num_scalar_prefetch=0,
                grid=grid,
                in_specs=[
                    small((N + 3, N)),   # W1 = [A; K]  (Y dtype -> native MXU)
                    small((N + 3, 3)),   # W2 = [B; C]
                    y_spec,              # Y tile
                    beta_spec,           # beta tile
                ],
                out_specs=(y_spec, beta_spec),
            ),
            compiler_params=pltpu.CompilerParams(
                dimension_semantics=("parallel",), vmem_limit_bytes=vmem),
        )(W1, W2, Y, beta_in)
        return res_flat.reshape(x.shape), beta_new.astype(jnp.float32), P_new

    # Eval: K == 0 -> beta / P unchanged; skip the beta HBM writeback entirely.
    Bn = (-Xz).astype(beta_io_dtype)                                  # (N, 3)
    beta_in = beta32.astype(beta_io_dtype)
    vmem = _vmem_limit([(N, block_f, x.dtype), (3, block_f, beta_in.dtype),
                        (N, block_f, x.dtype)])
    res_flat = pl.pallas_call(
        _rmdn_eval_kernel,
        out_shape=jax.ShapeDtypeStruct((N, F), x.dtype),
        grid_spec=pltpu.PrefetchScalarGridSpec(
            num_scalar_prefetch=0,
            grid=grid,
            in_specs=[small((N, 3)), y_spec, beta_spec],
            out_specs=y_spec,
        ),
        compiler_params=pltpu.CompilerParams(
            dimension_semantics=("parallel",), vmem_limit_bytes=vmem),
    )(Bn, Y, beta_in)
    return res_flat.reshape(x.shape), beta, P


def _reference_forward(x, X, beta, P, *, training=True,
                       forgetting_factor=0.999, reg=1e-4):
    """Pure-JAX mirror of the PyTorch forward (for correctness checks)."""
    N = x.shape[0]
    Y = x.reshape(N, -1).astype(jnp.float32)
    X = X.astype(jnp.float32)
    beta = beta.astype(jnp.float32)
    P = P.astype(jnp.float32)
    if training:
        P = P / forgetting_factor
        K = P @ X.T @ jnp.linalg.inv(jnp.eye(N, dtype=jnp.float32) + X @ P @ X.T)
        P = P - K @ X @ P + reg * jnp.eye(3, dtype=jnp.float32)
        beta = beta + K @ (Y - X @ beta)
    Y_r = X[:, 1:] @ beta[1:]
    return (Y - Y_r).reshape(x.shape), beta, P


if __name__ == "__main__":
    key = jax.random.PRNGKey(0)
    kx, kb, kx2 = jax.random.split(key, 3)

    # ---- case 1: NCHW, num_features = C*H*W = 4*16*16 = 1024 (tile-aligned) ----
    N, C, H, W = 4, 4, 16, 16
    num_features = C * H * W
    x = jax.random.normal(kx, (N, C, H, W), dtype=jnp.float32)
    bias = jnp.concatenate(
        [jnp.ones((N, 1), jnp.float32),
         jax.random.normal(kb, (N, 2), dtype=jnp.float32)], axis=1)

    delta = 0.01
    P0 = jnp.eye(3, dtype=jnp.float32) / delta            # self.P
    beta0 = jnp.zeros((3, num_features), jnp.float32)     # self.beta

    residual, beta1, P1 = rmdn_forward(
        x, bias, beta0, P0, training=True, forgetting_factor=0.999, reg=1e-4)
    jax.block_until_ready((residual, beta1, P1))
    ref_res, ref_beta, ref_P = _reference_forward(
        x, bias, beta0, P0, training=True, forgetting_factor=0.999, reg=1e-4)
    assert jnp.allclose(residual, ref_res, atol=1e-4, rtol=1e-4)
    assert jnp.allclose(beta1, ref_beta, atol=1e-4, rtol=1e-4)
    assert jnp.allclose(P1, ref_P, atol=1e-4, rtol=1e-4)

    # eval-mode forward: buffers must stay unchanged, no beta writeback kernel.
    res_eval, beta2, P2 = rmdn_forward(x, bias, beta1, P1, training=False)
    jax.block_until_ready(res_eval)
    ref_res_e, _, _ = _reference_forward(x, bias, ref_beta, ref_P, training=False)
    assert jnp.allclose(res_eval, ref_res_e, atol=1e-4, rtol=1e-4)
    assert jnp.allclose(beta2, beta1) and jnp.allclose(P2, P1)

    # ---- case 2: ragged F = 3*10*10 = 300 (exercises masked partial last tile,
    #              no jnp.pad / output re-slice path) ----
    x2 = jax.random.normal(kx2, (N, 3, 10, 10), dtype=jnp.float32)
    beta0_2 = jnp.zeros((3, 300), jnp.float32)
    res2, beta2n, P2n = rmdn_forward(x2, bias, beta0_2, P0, training=True)
    jax.block_until_ready((res2, beta2n, P2n))
    rres2, rbeta2, rP2 = _reference_forward(x2, bias, beta0_2, P0, training=True)
    assert jnp.allclose(res2, rres2, atol=1e-4, rtol=1e-4)
    assert jnp.allclose(beta2n, rbeta2, atol=1e-4, rtol=1e-4)
    assert jnp.allclose(P2n, rP2, atol=1e-4, rtol=1e-4)

    # ---- case 3: bf16 activations (native bf16 MXU path, f32 accumulate) ----
    x_bf = x.astype(jnp.bfloat16)
    res_bf, beta_bf, _ = rmdn_forward(x_bf, bias, beta0, P0, training=True)
    jax.block_until_ready((res_bf, beta_bf))
    rres_bf, rbeta_bf, _ = _reference_forward(x_bf, bias, beta0, P0, training=True)
    assert jnp.allclose(res_bf.astype(jnp.float32), rres_bf, atol=5e-2, rtol=5e-2)
    assert jnp.allclose(beta_bf, rbeta_bf, atol=5e-2, rtol=5e-2)

    print("KERNEL_OK")
</pallas_src>

<mosaic_0001>
module attributes {stable_mosaic.version = 11 : i64} {
  func.func @_rmdn_train_kernel(%arg0: i32, %arg1: memref<7x4xf32, #tpu.memory_space<vmem>>, %arg2: memref<7x3xf32, #tpu.memory_space<vmem>>, %arg3: memref<4x512xf32, #tpu.memory_space<vmem>>, %arg4: memref<3x512xf32, #tpu.memory_space<vmem>>, %arg5: memref<4x512xf32, #tpu.memory_space<vmem>>, %arg6: memref<3x512xf32, #tpu.memory_space<vmem>>) attributes {dimension_semantics = [#tpu.dimension_semantics<parallel>], iteration_bounds = array<i64: 2>, scalar_prefetch = 0 : i64, scratch_operands = 0 : i64, tpu.core_type = #tpu.core_type<tc>, window_params = [{pipeline_mode = #tpu.pipeline_mode<synchronous>, transform_indices = @transform_0, window_bounds = array<i64: 7, 4>}, {pipeline_mode = #tpu.pipeline_mode<synchronous>, transform_indices = @transform_1, window_bounds = array<i64: 7, 3>}, {transform_indices = @transform_2, window_bounds = array<i64: 4, 512>}, {transform_indices = @transform_3, window_bounds = array<i64: 3, 512>}, {transform_indices = @transform_4, window_bounds = array<i64: 4, 512>}, {transform_indices = @transform_5, window_bounds = array<i64: 3, 512>}]} {
    %c0 = arith.constant 0 : index
    %c0_0 = arith.constant 0 : index
    %0 = vector.load %arg1[%c0, %c0_0] : memref<7x4xf32, #tpu.memory_space<vmem>>, vector<7x4xf32>
    %c0_1 = arith.constant 0 : index
    %c0_2 = arith.constant 0 : index
    %1 = vector.load %arg3[%c0_1, %c0_2] : memref<4x512xf32, #tpu.memory_space<vmem>>, vector<4x512xf32>
    %cst = arith.constant dense<0.000000e+00> : vector<7x512xf32>
    %2 = tpu.matmul %0, %1, %cst {dimension_numbers = #tpu.dot_dimension_numbers<[1], [0], [0], [1], [0, 0, 1, 1], [], []>} : vector<7x4xf32>, vector<4x512xf32>, vector<7x512xf32> -> vector<7x512xf32>
    %c0_3 = arith.constant 0 : index
    %c0_4 = arith.constant 0 : index
    %3 = vector.load %arg2[%c0_3, %c0_4] : memref<7x3xf32, #tpu.memory_space<vmem>>, vector<7x3xf32>
    %c0_5 = arith.constant 0 : index
    %c0_6 = arith.constant 0 : index
    %4 = vector.load %arg4[%c0_5, %c0_6] : memref<3x512xf32, #tpu.memory_space<vmem>>, vector<3x512xf32>
    %cst_7 = arith.constant dense<0.000000e+00> : vector<7x512xf32>
    %5 = tpu.matmul %3, %4, %cst_7 {dimension_numbers = #tpu.dot_dimension_numbers<[1], [0], [0], [1], [0, 0, 1, 1], [], []>} : vector<7x3xf32>, vector<3x512xf32>, vector<7x512xf32> -> vector<7x512xf32>
    %6 = arith.addf %2, %5 : vector<7x512xf32>
    %7 = vector.extract_strided_slice %6 {offsets = [0, 0], sizes = [4, 512], strides = [1, 1]} : vector<7x512xf32> to vector<4x512xf32>
    %c0_8 = arith.constant 0 : index
    %c0_9 = arith.constant 0 : index
    %8 = vector.load %arg5[%c0_8, %c0_9] : memref<4x512xf32, #tpu.memory_space<vmem>>, vector<4x512xf32>
    tpu.vector_store %arg5[%c0_8, %c0_9], %7 {strides = array<i32>} : memref<4x512xf32, #tpu.memory_space<vmem>>, vector<4x512xf32>,
    %9 = vector.extract_strided_slice %6 {offsets = [4, 0], sizes = [3, 512], strides = [1, 1]} : vector<7x512xf32> to vector<3x512xf32>
    %c0_10 = arith.constant 0 : index
    %c0_11 = arith.constant 0 : index
    %10 = vector.load %arg6[%c0_10, %c0_11] : memref<3x512xf32, #tpu.memory_space<vmem>>, vector<3x512xf32>
    tpu.vector_store %arg6[%c0_10, %c0_11], %9 {strides = array<i32>} : memref<3x512xf32, #tpu.memory_space<vmem>>, vector<3x512xf32>,
    return
  }
  func.func @transform_0(%arg0: i32) -> (i32, i32) {
    %c0_i32 = arith.constant 0 : i32
    %c0_i32_0 = arith.constant 0 : i32
    %c0_i32_1 = arith.constant 0 : i32
    return %c0_i32, %c0_i32_0 : i32, i32
  }
  func.func @transform_1(%arg0: i32) -> (i32, i32) {
    %c0_i32 = arith.constant 0 : i32
    %c0_i32_0 = arith.constant 0 : i32
    %c0_i32_1 = arith.constant 0 : i32
    return %c0_i32, %c0_i32_0 : i32, i32
  }
  func.func @transform_2(%arg0: i32) -> (i32, i32) {
    %c0_i32 = arith.constant 0 : i32
    %c0_i32_0 = arith.constant 0 : i32
    return %c0_i32, %arg0 : i32, i32
  }
  func.func @transform_3(%arg0: i32) -> (i32, i32) {
    %c0_i32 = arith.constant 0 : i32
    %c0_i32_0 = arith.constant 0 : i32
    return %c0_i32, %arg0 : i32, i32
  }
  func.func @transform_4(%arg0: i32) -> (i32, i32) {
    %c0_i32 = arith.constant 0 : i32
    %c0_i32_0 = arith.constant 0 : i32
    return %c0_i32, %arg0 : i32, i32
  }
  func.func @transform_5(%arg0: i32) -> (i32, i32) {
    %c0_i32 = arith.constant 0 : i32
    %c0_i32_0 = arith.constant 0 : i32
    return %c0_i32, %arg0 : i32, i32
  }
}

</mosaic_0001>

<llo_original>
// kernel: tpu_custom_call.1
$region0: #{tpu_custom_call.1}
  #allocation0 [shape = 'u32[]', space=smem, size = 0x4, offset = 0x4, fixed_abs, tag = 'smem constant byte address 0x4 - core index']
  #allocation1 [shape = 'u32[144,128]{1,0:T(1,128)}', space=vmem, size = 0x12000, scoped, tag = 'internal scratch']
  %s0 = inlined_call_operand.vmem [shape: f32[7,4], index: 0, kind: input, shape index: {}]
  %s1 = inlined_call_operand.vmem [shape: f32[7,3], index: 1, kind: input, shape index: {}]
  %s2 = inlined_call_operand.hbm [shape: f32[4,1024], index: 2, kind: input, shape index: {}]
  %s3 = inlined_call_operand.vmem [shape: f32[3,1024], index: 3, kind: input, shape index: {}]
  %s4 = inlined_call_operand.hbm [shape: f32[4,1024], index: 4, kind: output, shape index: {0}]
  %s5 = inlined_call_operand.hbm [shape: f32[3,1024], index: 5, kind: output, shape index: {1}]
  %6 = xla_tuple %s4, %s5
  %s7 = sld [smem:[#allocation0]]
  $region61: #{tpu_custom_call.1} parent=0
    _
  %s9 = ssub.s32 1, %s7
  %s10 = scalar_select 0, %s9, %s7
  $region1: #{tpu_custom_call.1} parent=0
    #allocation2 [shape = 'u8[16384]{0}', space=vmem, size = 0x4000, scoped, tag = 'input window, operand 2']
    #allocation3 [shape = 's32[2]{0}', space=sflag, size = 0x8, scoped, tag = 'scoped memory for tpu_custom_call.1']
    #allocation4 [shape = 's32[2]{0}', space=sflag, size = 0x8, scoped, tag = 'scoped memory for tpu_custom_call.1']
    #allocation5 [shape = 'u8[16384]{0}', space=vmem, size = 0x4000, scoped, tag = 'output window, operand 0']
    #allocation6 [shape = 'u8[16384]{0}', space=vmem, size = 0x4000, scoped, tag = 'output window, operand 1']
    #allocation7 [shape = 's32[2]{0}', space=sflag, size = 0x8, scoped, tag = 'scoped memory for tpu_custom_call.1']
    %11 = vsyncpa [#allocation3], 0
    %s12 = scalar_lea.sflag [#allocation3], 1
    %13 = vsyncpa %s12, 0
    %14 = vsyncpa [#allocation4], 0
    %s15 = scalar_lea.sflag [#allocation4], 1
    %16 = vsyncpa %s15, 0
    %17 = vsyncpa [#allocation7], 0
    %s18 = scalar_lea.sflag [#allocation7], 1
    %19 = vsyncpa %s18, 0
    loop: start=0, step=1, limit=4
    $region2: #{tpu_custom_call.1} parent=1 // loop_pre_header
      _
    $region3: #{tpu_custom_call.1} parent=1 // loop_header
      %s21 = sphi 0, %s25
      %p22 = scmp.ge.s32.totalorder %s21, 4
      %s29 = sphi 0, %s29
      %s31 = sphi 0, %s29
      %s32 = sphi 0, %s31
      %s46 = sphi 0, %s32
      %s50 = sphi 0, %s50
      %s52 = sphi 0, %s50
      %s53 = sphi 0, %s52
      %s67 = sphi 0, %s53
      %s73 = sphi 0, %s75
      %s76 = sphi 0, %s73
      %s77 = sphi 0, %s76
      %s93 = sphi 0, %s77
      %s99 = sphi 0, %s101
      %s102 = sphi 0, %s99
      %s103 = sphi 0, %s102
      %s119 = sphi 0, %s103
      %s125 = sphi 0, %s127
      %s128 = sphi 0, %s125
      %s129 = sphi 0, %s128
      %s145 = sphi 0, %s129
      %s151 = sphi 0, %s153
      %s154 = sphi 0, %s151
      %s155 = sphi 0, %s154
      %s171 = sphi 0, %s155
    $region4: #{tpu_custom_call.1} parent=1 // loop_header_branch
      %24 = sbr.rel (%p22) target = $region8
    $region5: #{tpu_custom_call.1} parent=1 // loop_body
      %s26 = ssub.s32 %s21, 1
      %s27 = ssub.s32 %s21, 2
      %s28 = sadd.s32 %s21, 1
      %s30 = sadd.s32 %s29, 1
      %p33 = scmp.eq.s32.totalorder %s21, 1
      %p34 = scmp.ne.s32.totalorder %s29, %s31
      %p35 = scmp.eq.s32.totalorder %s21, 0
      %p36 = por %p34, %p35
      %p37 = scmp.ne.s32.totalorder %s29, %s31
      %p38 = scmp.eq.s32.totalorder %s26, 1
      %p39 = por %p37, %p38
      %p40 = scmp.ne.s32.totalorder %s31, %s32
      %p41 = scmp.eq.s32.totalorder %s26, 0
      %p42 = por %p40, %p41
      %p43 = scmp.ne.s32.totalorder %s31, %s32
      %p44 = scmp.eq.s32.totalorder %s27, 1
      %p45 = por %p43, %p44
      %p47 = scmp.ne.s32.totalorder %s32, %s46
      %p48 = scmp.eq.s32.totalorder %s27, 0
      %p49 = por %p47, %p48
      %s51 = sadd.s32 %s50, 1
      %p54 = scmp.eq.s32.totalorder %s21, 1
      %p55 = scmp.ne.s32.totalorder %s50, %s52
      %p56 = scmp.eq.s32.totalorder %s21, 0
      %p57 = por %p55, %p56
      %p58 = scmp.ne.s32.totalorder %s50, %s52
      %p59 = scmp.eq.s32.totalorder %s26, 1
      %p60 = por %p58, %p59
      %p61 = scmp.ne.s32.totalorder %s52, %s53
      %p62 = scmp.eq.s32.totalorder %s26, 0
      %p63 = por %p61, %p62
      %p64 = scmp.ne.s32.totalorder %s52, %s53
      %p65 = scmp.eq.s32.totalorder %s27, 1
      %p66 = por %p64, %p65
      %p68 = scmp.ne.s32.totalorder %s53, %s67
      %p69 = scmp.eq.s32.totalorder %s27, 0
      %p70 = por %p68, %p69
      %s71 = ssub.s32 %s21, %s28
      %p72 = scmp.eq.s32.totalorder %s71, 0
      %s74 = sadd.s32 %s73, 1
      %s75 = scalar_select %p72, %s73, %s74
      %p78 = pneg %p72
      %p79 = scmp.eq.s32.totalorder %s21, 1
      %p80 = por %p78, %p79
      %p81 = scmp.ne.s32.totalorder %s73, %s76
      %p82 = scmp.eq.s32.totalorder %s21, 0
      %p83 = por %p81, %p82
      %p84 = scmp.ne.s32.totalorder %s73, %s76
      %p85 = scmp.eq.s32.totalorder %s26, 1
      %p86 = por %p84, %p85
      %p87 = scmp.ne.s32.totalorder %s76, %s77
      %p88 = scmp.eq.s32.totalorder %s26, 0
      %p89 = por %p87, %p88
      %p90 = scmp.ne.s32.totalorder %s76, %s77
      %p91 = scmp.eq.s32.totalorder %s27, 1
      %p92 = por %p90, %p91
      %p94 = scmp.ne.s32.totalorder %s77, %s93
      %p95 = scmp.eq.s32.totalorder %s27, 0
      %p96 = por %p94, %p95
      %s97 = ssub.s32 %s21, %s28
      %p98 = scmp.eq.s32.totalorder %s97, 0
      %s100 = sadd.s32 %s99, 1
      %s101 = scalar_select %p98, %s99, %s100
      %p104 = pneg %p98
      %p105 = scmp.eq.s32.totalorder %s21, 1
      %p106 = por %p104, %p105
      %p107 = scmp.ne.s32.totalorder %s99, %s102
      %p108 = scmp.eq.s32.totalorder %s21, 0
      %p109 = por %p107, %p108
      %p110 = scmp.ne.s32.totalorder %s99, %s102
      %p111 = scmp.eq.s32.totalorder %s26, 1
      %p112 = por %p110, %p111
      %p113 = scmp.ne.s32.totalorder %s102, %s103
      %p114 = scmp.eq.s32.totalorder %s26, 0
      %p115 = por %p113, %p114
      %p116 = scmp.ne.s32.totalorder %s102, %s103
      %p117 = scmp.eq.s32.totalorder %s27, 1
      %p118 = por %p116, %p117
      %p120 = scmp.ne.s32.totalorder %s103, %s119
      %p121 = scmp.eq.s32.totalorder %s27, 0
      %p122 = por %p120, %p121
      %s123 = ssub.s32 %s21, %s28
      %p124 = scmp.eq.s32.totalorder %s123, 0
      %s126 = sadd.s32 %s125, 1
      %s127 = scalar_select %p124, %s125, %s126
      %p130 = pneg %p124
      %p131 = scmp.eq.s32.totalorder %s21, 1
      %p132 = por %p130, %p131
      %p133 = scmp.ne.s32.totalorder %s125, %s128
      %p134 = scmp.eq.s32.totalorder %s21, 0
      %p135 = por %p133, %p134
      %p136 = scmp.ne.s32.totalorder %s125, %s128
      %p137 = scmp.eq.s32.totalorder %s26, 1
      %p138 = por %p136, %p137
      %p139 = scmp.ne.s32.totalorder %s128, %s129
      %p140 = scmp.eq.s32.totalorder %s26, 0
      %p141 = por %p139, %p140
      %p142 = scmp.ne.s32.totalorder %s128, %s129
      %p143 = scmp.eq.s32.totalorder %s27, 1
      %p144 = por %p142, %p143
      %p146 = scmp.ne.s32.totalorder %s129, %s145
      %p147 = scmp.eq.s32.totalorder %s27, 0
      %p148 = por %p146, %p147
      %s149 = ssub.s32 %s21, %s28
      %p150 = scmp.eq.s32.totalorder %s149, 0
      %s152 = sadd.s32 %s151, 1
      %s153 = scalar_select %p150, %s151, %s152
      %p156 = pneg %p150
      %p157 = scmp.eq.s32.totalorder %s21, 1
      %p158 = por %p156, %p157
      %p159 = scmp.ne.s32.totalorder %s151, %s154
      %p160 = scmp.eq.s32.totalorder %s21, 0
      %p161 = por %p159, %p160
      %p162 = scmp.ne.s32.totalorder %s151, %s154
      %p163 = scmp.eq.s32.totalorder %s26, 1
      %p164 = por %p162, %p163
      %p165 = scmp.ne.s32.totalorder %s154, %s155
      %p166 = scmp.eq.s32.totalorder %s26, 0
      %p167 = por %p165, %p166
      %p168 = scmp.ne.s32.totalorder %s154, %s155
      %p169 = scmp.eq.s32.totalorder %s27, 1
      %p170 = por %p168, %p169
      %p172 = scmp.ne.s32.totalorder %s155, %s171
      %p173 = scmp.eq.s32.totalorder %s27, 0
      %p174 = por %p172, %p173
      %p175 = scmp.le.s32.totalorder 1, %s21
      %p176 = scmp.lt.s32.totalorder %s21, 3
      %p177 = pnand %p175, %p176
      %p178 = pneg %p177
      // Predicated region
      $region9: #{tpu_custom_call.1} parent=5 // pred_check
        _
      $region10: #{tpu_custom_call.1} parent=5 // pred_check_branch
        %180 = sbr.rel (%p177) target = $region12
      $region11: #{tpu_custom_call.1} parent=5 // pred_region
        %s181 = ssub.s32 %s21, 1
        // Predicated region
        $region13: #{tpu_custom_call.1} parent=11 // pred_check
          %p182 = pneg %p42
        $region14: #{tpu_custom_call.1} parent=11 // pred_check_branch
          %184 = sbr.rel (%p182) target = $region16
        $region15: #{tpu_custom_call.1} parent=11 // pred_region
          _
        $region16: #{tpu_custom_call.1} parent=11 // pred_fallthru
          _
        // Predicated region
        $region17: #{tpu_custom_call.1} parent=11 // pred_check
          %p185 = pneg %p63
        $region18: #{tpu_custom_call.1} parent=11 // pred_check_branch
          %187 = sbr.rel (%p185) target = $region20
        $region19: #{tpu_custom_call.1} parent=11 // pred_region
          _
        $region20: #{tpu_custom_call.1} parent=11 // pred_fallthru
          _
      $region12: #{tpu_custom_call.1} parent=5 // pred_fallthru
        _
      %p188 = scmp.lt.s32.totalorder %s21, 2
      // Predicated region
      $region21: #{tpu_custom_call.1} parent=5 // pred_check
        %p189 = pneg %p188
      $region22: #{tpu_custom_call.1} parent=5 // pred_check_branch
        %191 = sbr.rel (%p189) target = $region24
      $region23: #{tpu_custom_call.1} parent=5 // pred_region
        // Predicated region
        $region25: #{tpu_custom_call.1} parent=23 // pred_check
          %p192 = pneg %p83
        $region26: #{tpu_custom_call.1} parent=23 // pred_check_branch
          %194 = sbr.rel (%p192) target = $region28
        $region27: #{tpu_custom_call.1} parent=23 // pred_region
          %s195 = sand.u32 %s73, 1
          %s196 = scalar_lea.sflag [#allocation3], %s195
          %s197 = sand.u32 %s73, 1
          %s198 = smul.addr %s197, 16
          %s199 = scalar_lea.vmem [#allocation2], %s198
          %s200 = smul.u32 4, %s21
          %s202 = ssub.s32 256, 256
          %203 = vsyncadd %s196, %s202
          %s204 = smul.addr %s200, 64
          %s205 = scalar_lea.hbm %s2, %s204
          %s207 = sshll.u32 %s199, 4
          %s208 = int_to_ptr.vmem [resolvable:$true] %s207
          %210 = dma.hbm_to_vmem [thread:$0]  %s205, 256, %s208, %s196
        $region28: #{tpu_custom_call.1} parent=23 // pred_fallthru
          _
        // Predicated region
        $region29: #{tpu_custom_call.1} parent=23 // pred_check
          %p211 = pneg %p109
        $region30: #{tpu_custom_call.1} parent=23 // pred_check_branch
          %213 = sbr.rel (%p211) target = $region32
        $region31: #{tpu_custom_call.1} parent=23 // pred_region
          %s214 = smul.u32 4, %s21
          %p215 = scmp.lt.s32.totalorder %s214, 7
          %s216 = scalar_select %p215, %s214, 7
          %s217 = smul.addr %s216, 4
          %s218 = scalar_lea.vmem %s3, %s217
          %s219 = smul.u32 4, %s21
        $region32: #{tpu_custom_call.1} parent=23 // pred_fallthru
          _
      $region24: #{tpu_custom_call.1} parent=5 // pred_fallthru
        _
      %p220 = scmp.le.s32.totalorder 1, %s21
      %p221 = scmp.lt.s32.totalorder %s21, 3
      %p222 = pnand %p220, %p221
      %p223 = pneg %p222
      // Predicated region
      $region33: #{tpu_custom_call.1} parent=5 // pred_check
        _
      $region34: #{tpu_custom_call.1} parent=5 // pred_check_branch
        %225 = sbr.rel (%p222) target = $region36
      $region35: #{tpu_custom_call.1} parent=5 // pred_region
        %s226 = ssub.s32 %s21, 1
        %s227 = sand.u32 %s76, 1
        %s228 = scalar_lea.sflag [#allocation3], %s227
        %s229 = sand.u32 %s76, 1
        %s230 = smul.addr %s229, 16
        %s231 = scalar_lea.vmem [#allocation2], %s230
        // Predicated region
        $region37: #{tpu_custom_call.1} parent=35 // pred_check
          %p232 = pneg %p89
        $region38: #{tpu_custom_call.1} parent=35 // pred_check_branch
          %234 = sbr.rel (%p232) target = $region40
        $region39: #{tpu_custom_call.1} parent=35 // pred_region
          %235 = dma.done %s228, 256
        $region40: #{tpu_custom_call.1} parent=35 // pred_fallthru
          _
        %p236 = pneg %p42
        %p237 = pneg %p39
        %p238 = pneg %p63
        %p239 = pneg %p60
        %s240 = sand.u32 %s76, 1
        %s241 = scalar_lea.sflag [#allocation3], %s240
        %s242 = sand.u32 %s76, 1
        %s243 = smul.addr %s242, 16
        %s244 = scalar_lea.vmem [#allocation2], %s243
        %p245 = pneg %p89
        %p246 = pneg %p86
        %s247 = smul.u32 4, %s26
        %p248 = scmp.lt.s32.totalorder %s247, 7
        %s249 = scalar_select %p248, %s247, 7
        %s250 = smul.addr %s249, 4
        %s251 = scalar_lea.vmem %s3, %s250
        %p252 = pneg %p115
        %p253 = pneg %p112
        %p254 = pneg %p141
        %p255 = pneg %p138
        %s256 = sand.u32 %s128, 1
        %s257 = scalar_lea.sflag [#allocation4], %s256
        %s258 = sand.u32 %s128, 1
        %s259 = smul.addr %s258, 16
        %s260 = scalar_lea.vmem [#allocation5], %s259
        %p261 = pneg %p167
        %p262 = pneg %p164
        %s263 = sand.u32 %s154, 1
        %s264 = scalar_lea.sflag [#allocation7], %s263
        %s265 = sand.u32 %s154, 1
        %s266 = smul.addr %s265, 16
        %s267 = scalar_lea.vmem [#allocation6], %s266
        %s268 = smul.u32 4, %s26
        %s269 = smul.u32 4, %s26
        %p270 = scmp.lt.s32.totalorder %s269, 7
        %s271 = scalar_select %p270, %s269, 7
        %s272 = smul.addr %s271, 4
        %s273 = scalar_lea.vmem %s3, %s272
        %s274 = smul.u32 4, %s26
        %s275 = smul.u32 4, %s26
        %s276 = smul.u32 4, %s26
        %v277 = vld [vmem:[%s0] sm:$0x7f]
        %v278 = vld [vmem:[%s231] sm:$0xff]
        %v279 = vld [vmem:[%s231 + $0x8] sm:$0xff]
        %v280 = vld [vmem:[%s1] sm:$0x7f]
        %v281 = vld [vmem:[%s273] sm:$0x77]
        %v282 = vld [vmem:[%s273 + $0x8] sm:$0x77]
        %v285 = vcombine.high %v281, %v281
        %v286 = vcombine.high %v282, %v282
        %vm287 = vcmask 23552
        %v289 = vsel %vm287, %v280, 0
        %vm291 = vcmask 1042432
        %v292 = vsel %vm291, %v281, 0
        %v294 = vsel %vm291, %v285, 0
        %v296 = vsel %vm291, %v282, 0
        %v298 = vsel %vm291, %v286, 0
        %300 = vmatprep.subr.mxu0 %v294
        %301 = vmatpush1.msra.mxu0 %v292
        %302 = vmatprep.subr.mxu0 0.0
        %303 = vmatpush1.msra.mxu0 0.0
        %304 = vmatprep.subr.mxu0 0.0
        %305 = vmatpush1.msra.mxu0 0.0
        %306 = vmatprep.subr.mxu0 0.0
        %307 = vmatpush1.msra.mxu0 0.0
        %308 = vmatprep.subr.mxu0 0.0
        %309 = vmatpush1.msra.mxu0 0.0
        %310 = vmatprep.subr.mxu0 0.0
        %311 = vmatpush1.msra.mxu0 0.0
        %312 = vmatprep.subr.mxu0 0.0
        %313 = vmatpush1.msra.mxu0 0.0
        %314 = vmatprep.subr.mxu0 0.0
        %315 = vmatpush1.msra.mxu0 0.0
        %316 = vmatprep.subr.mxu0 0.0
        %317 = vmatpush1.msra.mxu0 0.0
        %318 = vmatprep.subr.mxu0 0.0
        %319 = vmatpush1.msra.mxu0 0.0
        %320 = vmatprep.subr.mxu0 0.0
        %321 = vmatpush1.msra.mxu0 0.0
        %322 = vmatprep.subr.mxu0 0.0
        %323 = vmatpush1.msra.mxu0 0.0
        %324 = vmatprep.subr.mxu0 0.0
        %325 = vmatpush1.msra.mxu0 0.0
        %326 = vmatprep.subr.mxu0 0.0
        %327 = vmatpush1.msra.mxu0 0.0
        %328 = vmatprep.subr.mxu0 0.0
        %329 = vmatpush1.msra.mxu0 0.0
        %330 = vmatprep.subr.mxu0 0.0
        %331 = vmatpush1.msra.mxu0 0.0
        %332 = vmatprep.subr.mxu0 0.0
        %333 = vmatpush1.msra.mxu0 0.0
        %334 = vmatprep.subr.mxu0 0.0
        %335 = vmatpush1.msra.mxu0 0.0
        %336 = vmatprep.subr.mxu0 0.0
        %337 = vmatpush1.msra.mxu0 0.0
        %338 = vmatprep.subr.mxu0 0.0
        %339 = vmatpush1.msra.mxu0 0.0
        %340 = vmatprep.subr.mxu0 0.0
        %341 = vmatpush1.msra.mxu0 0.0
        %342 = vmatprep.subr.mxu0 0.0
        %343 = vmatpush1.msra.mxu0 0.0
        %344 = vmatprep.subr.mxu0 0.0
        %345 = vmatpush1.msra.mxu0 0.0
        %346 = vmatprep.subr.mxu0 0.0
        %347 = vmatpush1.msra.mxu0 0.0
        %348 = vmatprep.subr.mxu0 0.0
        %349 = vmatpush1.msra.mxu0 0.0
        %350 = vmatprep.subr.mxu0 0.0
        %351 = vmatpush1.msra.mxu0 0.0
        %352 = vmatprep.subr.mxu0 0.0
        %353 = vmatpush1.msra.mxu0 0.0
        %354 = vmatprep.subr.mxu0 0.0
        %355 = vmatpush1.msra.mxu0 0.0
        %356 = vmatprep.subr.mxu0 0.0
        %357 = vmatpush1.msra.mxu0 0.0
        %358 = vmatprep.subr.mxu0 0.0
        %359 = vmatpush1.msra.mxu0 0.0
        %360 = vmatprep.subr.mxu0 0.0
        %361 = vmatpush1.msra.mxu0 0.0
        %362 = vmatprep.subr.mxu0 0.0
        %363 = vmatpush1.msra.mxu0 0.0
        %364 = vmatprep.mubr.f32.mxu0 0.0
        %365 = vmatmul.mubr.f32.gmra.mrb[0].mxu0 %v289
        %v366 = vpop.f32.mrb[0].mxu0
        %v367 = vadd.f32 0.0, %v366
        %v368 = vpop.f32.mrb[0].mxu0
        %v369 = vadd.f32 0.0, %v368
        %370 = vdwg.mxu0
        %371 = vmatprep.subr.mxu0 %v298
        %372 = vmatpush1.msra.mxu0 %v296
        %373 = vmatprep.subr.mxu0 0.0
        %374 = vmatpush1.msra.mxu0 0.0
        %375 = vmatprep.subr.mxu0 0.0
        %376 = vmatpush1.msra.mxu0 0.0
        %377 = vmatprep.subr.mxu0 0.0
        %378 = vmatpush1.msra.mxu0 0.0
        %379 = vmatprep.subr.mxu0 0.0
        %380 = vmatpush1.msra.mxu0 0.0
        %381 = vmatprep.subr.mxu0 0.0
        %382 = vmatpush1.msra.mxu0 0.0
        %383 = vmatprep.subr.mxu0 0.0
        %384 = vmatpush1.msra.mxu0 0.0
        %385 = vmatprep.subr.mxu0 0.0
        %386 = vmatpush1.msra.mxu0 0.0
        %387 = vmatprep.subr.mxu0 0.0
        %388 = vmatpush1.msra.mxu0 0.0
        %389 = vmatprep.subr.mxu0 0.0
        %390 = vmatpush1.msra.mxu0 0.0
        %391 = vmatprep.subr.mxu0 0.0
        %392 = vmatpush1.msra.mxu0 0.0
        %393 = vmatprep.subr.mxu0 0.0
        %394 = vmatpush1.msra.mxu0 0.0
        %395 = vmatprep.subr.mxu0 0.0
        %396 = vmatpush1.msra.mxu0 0.0
        %397 = vmatprep.subr.mxu0 0.0
        %398 = vmatpush1.msra.mxu0 0.0
        %399 = vmatprep.subr.mxu0 0.0
        %400 = vmatpush1.msra.mxu0 0.0
        %401 = vmatprep.subr.mxu0 0.0
        %402 = vmatpush1.msra.mxu0 0.0
        %403 = vmatprep.subr.mxu0 0.0
        %404 = vmatpush1.msra.mxu0 0.0
        %405 = vmatprep.subr.mxu0 0.0
        %406 = vmatpush1.msra.mxu0 0.0
        %407 = vmatprep.subr.mxu0 0.0
        %408 = vmatpush1.msra.mxu0 0.0
        %409 = vmatprep.subr.mxu0 0.0
        %410 = vmatpush1.msra.mxu0 0.0
        %411 = vmatprep.subr.mxu0 0.0
        %412 = vmatpush1.msra.mxu0 0.0
        %413 = vmatprep.subr.mxu0 0.0
        %414 = vmatpush1.msra.mxu0 0.0
        %415 = vmatprep.subr.mxu0 0.0
        %416 = vmatpush1.msra.mxu0 0.0
        %417 = vmatprep.subr.mxu0 0.0
        %418 = vmatpush1.msra.mxu0 0.0
        %419 = vmatprep.subr.mxu0 0.0
        %420 = vmatpush1.msra.mxu0 0.0
        %421 = vmatprep.subr.mxu0 0.0
        %422 = vmatpush1.msra.mxu0 0.0
        %423 = vmatprep.subr.mxu0 0.0
        %424 = vmatpush1.msra.mxu0 0.0
        %425 = vmatprep.subr.mxu0 0.0
        %426 = vmatpush1.msra.mxu0 0.0
        %427 = vmatprep.subr.mxu0 0.0
        %428 = vmatpush1.msra.mxu0 0.0
        %429 = vmatprep.subr.mxu0 0.0
        %430 = vmatpush1.msra.mxu0 0.0
        %431 = vmatprep.subr.mxu0 0.0
        %432 = vmatpush1.msra.mxu0 0.0
        %433 = vmatprep.subr.mxu0 0.0
        %434 = vmatpush1.msra.mxu0 0.0
        %435 = vmatprep.mubr.f32.mxu0 0.0
        %436 = vmatmul.mubr.f32.gmra.mrb[0].mxu0 %v289
        %v437 = vpop.f32.mrb[0].mxu0
        %v438 = vadd.f32 0.0, %v437
        %v439 = vpop.f32.mrb[0].mxu0
        %v440 = vadd.f32 0.0, %v439
        %441 = vdwg.mxu0
        %v444 = vcombine.high %v278, %v278
        %v445 = vcombine.high %v279, %v279
        %vm446 = vcmask 31744
        %v448 = vsel %vm446, %v277, 0
        %vm450 = vcmask 1043456
        %v451 = vsel %vm450, %v278, 0
        %v453 = vsel %vm450, %v444, 0
        %v455 = vsel %vm450, %v279, 0
        %v457 = vsel %vm450, %v445, 0
        %459 = vmatprep.subr.mxu0 %v453
        %460 = vmatpush1.msra.mxu0 %v451
        %461 = vmatprep.subr.mxu0 0.0
        %462 = vmatpush1.msra.mxu0 0.0
        %463 = vmatprep.subr.mxu0 0.0
        %464 = vmatpush1.msra.mxu0 0.0
        %465 = vmatprep.subr.mxu0 0.0
        %466 = vmatpush1.msra.mxu0 0.0
        %467 = vmatprep.subr.mxu0 0.0
        %468 = vmatpush1.msra.mxu0 0.0
        %469 = vmatprep.subr.mxu0 0.0
        %470 = vmatpush1.msra.mxu0 0.0
        %471 = vmatprep.subr.mxu0 0.0
        %472 = vmatpush1.msra.mxu0 0.0
        %473 = vmatprep.subr.mxu0 0.0
        %474 = vmatpush1.msra.mxu0 0.0
        %475 = vmatprep.subr.mxu0 0.0
        %476 = vmatpush1.msra.mxu0 0.0
        %477 = vmatprep.subr.mxu0 0.0
        %478 = vmatpush1.msra.mxu0 0.0
        %479 = vmatprep.subr.mxu0 0.0
        %480 = vmatpush1.msra.mxu0 0.0
        %481 = vmatprep.subr.mxu0 0.0
        %482 = vmatpush1.msra.mxu0 0.0
        %483 = vmatprep.subr.mxu0 0.0
        %484 = vmatpush1.msra.mxu0 0.0
        %485 = vmatprep.subr.mxu0 0.0
        %486 = vmatpush1.msra.mxu0 0.0
        %487 = vmatprep.subr.mxu0 0.0
        %488 = vmatpush1.msra.mxu0 0.0
        %489 = vmatprep.subr.mxu0 0.0
        %490 = vmatpush1.msra.mxu0 0.0
        %491 = vmatprep.subr.mxu0 0.0
        %492 = vmatpush1.msra.mxu0 0.0
        %493 = vmatprep.subr.mxu0 0.0
        %494 = vmatpush1.msra.mxu0 0.0
        %495 = vmatprep.subr.mxu0 0.0
        %496 = vmatpush1.msra.mxu0 0.0
        %497 = vmatprep.subr.mxu0 0.0
        %498 = vmatpush1.msra.mxu0 0.0
        %499 = vmatprep.subr.mxu0 0.0
        %500 = vmatpush1.msra.mxu0 0.0
        %501 = vmatprep.subr.mxu0 0.0
        %502 = vmatpush1.msra.mxu0 0.0
        %503 = vmatprep.subr.mxu0 0.0
        %504 = vmatpush1.msra.mxu0 0.0
        %505 = vmatprep.subr.mxu0 0.0
        %506 = vmatpush1.msra.mxu0 0.0
        %507 = vmatprep.subr.mxu0 0.0
        %508 = vmatpush1.msra.mxu0 0.0
        %509 = vmatprep.subr.mxu0 0.0
        %510 = vmatpush1.msra.mxu0 0.0
        %511 = vmatprep.subr.mxu0 0.0
        %512 = vmatpush1.msra.mxu0 0.0
        %513 = vmatprep.subr.mxu0 0.0
        %514 = vmatpush1.msra.mxu0 0.0
        %515 = vmatprep.subr.mxu0 0.0
        %516 = vmatpush1.msra.mxu0 0.0
        %517 = vmatprep.subr.mxu0 0.0
        %518 = vmatpush1.msra.mxu0 0.0
        %519 = vmatprep.subr.mxu0 0.0
        %520 = vmatpush1.msra.mxu0 0.0
        %521 = vmatprep.subr.mxu0 0.0
        %522 = vmatpush1.msra.mxu0 0.0
        %523 = vmatprep.mubr.f32.mxu0 0.0
        %524 = vmatmul.mubr.f32.gmra.mrb[0].mxu0 %v448
        %v525 = vpop.f32.mrb[0].mxu0
        %v526 = vadd.f32 %v367, %v525
        %v527 = vpop.f32.mrb[0].mxu0
        %v528 = vadd.f32 %v369, %v527
        %529 = vdwg.mxu0
        %530 = vmatprep.subr.mxu0 %v457
        %531 = vmatpush1.msra.mxu0 %v455
        %532 = vmatprep.subr.mxu0 0.0
        %533 = vmatpush1.msra.mxu0 0.0
        %534 = vmatprep.subr.mxu0 0.0
        %535 = vmatpush1.msra.mxu0 0.0
        %536 = vmatprep.subr.mxu0 0.0
        %537 = vmatpush1.msra.mxu0 0.0
        %538 = vmatprep.subr.mxu0 0.0
        %539 = vmatpush1.msra.mxu0 0.0
        %540 = vmatprep.subr.mxu0 0.0
        %541 = vmatpush1.msra.mxu0 0.0
        %542 = vmatprep.subr.mxu0 0.0
        %543 = vmatpush1.msra.mxu0 0.0
        %544 = vmatprep.subr.mxu0 0.0
        %545 = vmatpush1.msra.mxu0 0.0
        %546 = vmatprep.subr.mxu0 0.0
        %547 = vmatpush1.msra.mxu0 0.0
        %548 = vmatprep.subr.mxu0 0.0
        %549 = vmatpush1.msra.mxu0 0.0
        %550 = vmatprep.subr.mxu0 0.0
        %551 = vmatpush1.msra.mxu0 0.0
        %552 = vmatprep.subr.mxu0 0.0
        %553 = vmatpush1.msra.mxu0 0.0
        %554 = vmatprep.subr.mxu0 0.0
        %555 = vmatpush1.msra.mxu0 0.0
        %556 = vmatprep.subr.mxu0 0.0
        %557 = vmatpush1.msra.mxu0 0.0
        %558 = vmatprep.subr.mxu0 0.0
        %559 = vmatpush1.msra.mxu0 0.0
        %560 = vmatprep.subr.mxu0 0.0
        %561 = vmatpush1.msra.mxu0 0.0
        %562 = vmatprep.subr.mxu0 0.0
        %563 = vmatpush1.msra.mxu0 0.0
        %564 = vmatprep.subr.mxu0 0.0
        %565 = vmatpush1.msra.mxu0 0.0
        %566 = vmatprep.subr.mxu0 0.0
        %567 = vmatpush1.msra.mxu0 0.0
        %568 = vmatprep.subr.mxu0 0.0
        %569 = vmatpush1.msra.mxu0 0.0
        %570 = vmatprep.subr.mxu0 0.0
        %571 = vmatpush1.msra.mxu0 0.0
        %572 = vmatprep.subr.mxu0 0.0
        %573 = vmatpush1.msra.mxu0 0.0
        %574 = vmatprep.subr.mxu0 0.0
        %575 = vmatpush1.msra.mxu0 0.0
        %576 = vmatprep.subr.mxu0 0.0
        %577 = vmatpush1.msra.mxu0 0.0
        %578 = vmatprep.subr.mxu0 0.0
        %579 = vmatpush1.msra.mxu0 0.0
        %580 = vmatprep.subr.mxu0 0.0
        %581 = vmatpush1.msra.mxu0 0.0
        %582 = vmatprep.subr.mxu0 0.0
        %583 = vmatpush1.msra.mxu0 0.0
        %584 = vmatprep.subr.mxu0 0.0
        %585 = vmatpush1.msra.mxu0 0.0
        %586 = vmatprep.subr.mxu0 0.0
        %587 = vmatpush1.msra.mxu0 0.0
        %588 = vmatprep.subr.mxu0 0.0
        %589 = vmatpush1.msra.mxu0 0.0
        %590 = vmatprep.subr.mxu0 0.0
        %591 = vmatpush1.msra.mxu0 0.0
        %592 = vmatprep.subr.mxu0 0.0
        %593 = vmatpush1.msra.mxu0 0.0
        %594 = vmatprep.mubr.f32.mxu0 0.0
        %595 = vmatmul.mubr.f32.gmra.mrb[0].mxu0 %v448
        %v596 = vpop.f32.mrb[0].mxu0
        %v597 = vadd.f32 %v438, %v596
        %v598 = vpop.f32.mrb[0].mxu0
        %v599 = vadd.f32 %v440, %v598
        %600 = vdwg.mxu0
        %v605 = vcombine.low %v526, %v528
        %v606 = vcombine.low %v597, %v599
        %609 = vst [vmem:[%s260] sm:$0xff] %v605
        %610 = vst [vmem:[%s260 + $0x8] sm:$0xff] %v606
        %v611 = vcombine.high %v526, %v528
        %v612 = vcombine.high %v597, %v599
        %615 = vst [vmem:[%s267] sm:$0x77] %v611
        %616 = vst [vmem:[%s267 + $0x8] sm:$0x77] %v612
        %s617 = sand.u32 %s128, 1
        %s618 = scalar_lea.sflag [#allocation4], %s617
        %s619 = sand.u32 %s128, 1
        %s620 = smul.addr %s619, 16
        %s621 = scalar_lea.vmem [#allocation5], %s620
        %s622 = sand.u32 %s154, 1
        %s623 = scalar_lea.sflag [#allocation7], %s622
        %s624 = sand.u32 %s154, 1
        %s625 = smul.addr %s624, 16
        %s626 = scalar_lea.vmem [#allocation6], %s625
        // Predicated region
        $region41: #{tpu_custom_call.1} parent=35 // pred_check
          %p627 = pneg %p138
        $region42: #{tpu_custom_call.1} parent=35 // pred_check_branch
          %629 = sbr.rel (%p627) target = $region44
        $region43: #{tpu_custom_call.1} parent=35 // pred_region
          %s630 = smul.u32 4, %s26
          %s632 = ssub.s32 256, 256
          %633 = vsyncadd %s618, %s632
          %s634 = smul.addr %s630, 64
          %s635 = scalar_lea.hbm %s4, %s634
          %s637 = sshll.u32 %s621, 4
          %s638 = int_to_ptr.vmem [resolvable:$true] %s637
          %640 = dma.vmem_to_hbm [thread:$0]  %s638, 256, %s635, %s618
        $region44: #{tpu_custom_call.1} parent=35 // pred_fallthru
          _
        // Predicated region
        $region45: #{tpu_custom_call.1} parent=35 // pred_check
          %p641 = pneg %p164
        $region46: #{tpu_custom_call.1} parent=35 // pred_check_branch
          %643 = sbr.rel (%p641) target = $region48
        $region47: #{tpu_custom_call.1} parent=35 // pred_region
          %s644 = smul.u32 4, %s26
          %s646 = ssub.s32 256, 256
          %647 = vsyncadd %s623, %s646
          %s648 = smul.addr %s644, 64
          %s649 = scalar_lea.hbm %s5, %s648
          %s651 = sshll.u32 %s626, 4
          %s652 = int_to_ptr.vmem [resolvable:$true] %s651
          %654 = dma.vmem_to_hbm [thread:$0]  %s652, 256, %s649, %s623
        $region48: #{tpu_custom_call.1} parent=35 // pred_fallthru
          _
      $region36: #{tpu_custom_call.1} parent=5 // pred_fallthru
        _
      %p655 = scmp.le.s32.totalorder 2, %s21
      // Predicated region
      $region49: #{tpu_custom_call.1} parent=5 // pred_check
        %p656 = pneg %p655
      $region50: #{tpu_custom_call.1} parent=5 // pred_check_branch
        %658 = sbr.rel (%p656) target = $region52
      $region51: #{tpu_custom_call.1} parent=5 // pred_region
        %s659 = ssub.s32 %s21, 2
        // Predicated region
        $region53: #{tpu_custom_call.1} parent=51 // pred_check
          %p660 = pneg %p144
        $region54: #{tpu_custom_call.1} parent=51 // pred_check_branch
          %662 = sbr.rel (%p660) target = $region56
        $region55: #{tpu_custom_call.1} parent=51 // pred_region
          %s663 = sand.u32 %s129, 1
          %s664 = scalar_lea.sflag [#allocation4], %s663
          %s665 = sand.u32 %s129, 1
          %s666 = smul.addr %s665, 16
          %s667 = scalar_lea.vmem [#allocation5], %s666
          %668 = dma.done %s664, 256
        $region56: #{tpu_custom_call.1} parent=51 // pred_fallthru
          _
        // Predicated region
        $region57: #{tpu_custom_call.1} parent=51 // pred_check
          %p669 = pneg %p170
        $region58: #{tpu_custom_call.1} parent=51 // pred_check_branch
          %671 = sbr.rel (%p669) target = $region60
        $region59: #{tpu_custom_call.1} parent=51 // pred_region
          %s672 = sand.u32 %s155, 1
          %s673 = scalar_lea.sflag [#allocation7], %s672
          %s674 = sand.u32 %s155, 1
          %s675 = smul.addr %s674, 16
          %s676 = scalar_lea.vmem [#allocation6], %s675
          %677 = dma.done %s673, 256
        $region60: #{tpu_custom_call.1} parent=51 // pred_fallthru
          _
      $region52: #{tpu_custom_call.1} parent=5 // pred_fallthru
        _
    $region6: #{tpu_custom_call.1} parent=1 // loop_footer
      %s25 = sadd.s32 1, %s21
    $region7: #{tpu_custom_call.1} parent=1 // loop_footer_branch
      %20 = sbr.rel target = $region3
    $region8: #{tpu_custom_call.1} parent=1 // loop_exit
      _
    %678 = vsyncpa [#allocation3], 1
    %s679 = scalar_lea.sflag [#allocation3], 1
    %680 = vsyncpa %s679, 1
    %681 = vsyncpa [#allocation4], 1
    %s682 = scalar_lea.sflag [#allocation4], 1
    %683 = vsyncpa %s682, 1
    %684 = vsyncpa [#allocation7], 1
    %s685 = scalar_lea.sflag [#allocation7], 1
    %686 = vsyncpa %s685, 1

</llo_original>
